<compile_context>
chip_gen: v5e
topology: v5e:2x2
jax: 0.10.0
libtpu: 0.0.40
codegen_flags: <defaults>
</compile_context>

<pallas_src>
import jax
import jax.numpy as jnp
from jax.experimental import pallas as pl
from jax.experimental.pallas import tpu as pltpu

BN_EPS = 1e-5


def dqn_kernel(x_ref, w1_ref, w2_ref, wh_ref, o_ref):
    """Feature-major tiles: features on sublanes, batch on the 128-lane axis.

    Biases + BN affine are folded into augmented weights; the extra input row
    of x is the constant 1, and each augmented weight's last output row
    regenerates that constant 1 (which survives ReLU) for the next layer.
    """
    x = x_ref[...]                                                 # (4, NB) bf16, row 3 == 1

    # conv1 + BN (folded) + ReLU.
    h1 = jnp.dot(w1_ref[...], x, preferred_element_type=jnp.float32)
    h1 = jnp.maximum(h1.astype(w2_ref.dtype), 0.0)                 # (17, NB) bf16

    # conv2 + ReLU (bias folded, constant-1 row propagated).
    h2 = jnp.dot(w2_ref[...], h1, preferred_element_type=jnp.float32)
    h2 = jnp.maximum(h2.astype(wh_ref.dtype), 0.0)                 # (33, NB) bf16

    # head (bias folded; rows >= outputs are zero padding to a full sublane).
    y = jnp.dot(wh_ref[...], h2, preferred_element_type=jnp.float32)
    o_ref[...] = y.astype(o_ref.dtype)                             # (out_pad, NB) bf16


def _fold_params(params, out_pad, dtype):
    """Fold BN (running stats) + all biases into augmented feature-major weights."""
    (w1, b1, gamma, beta, mean, var, w2, b2, wh, bh) = params
    outputs = wh.shape[1]

    scale = gamma / jnp.sqrt(var + BN_EPS)                          # (1, 16)
    w1f = w1 * scale                                                # (3, 16)
    b1f = (b1 - mean) * scale + beta                                # (1, 16)

    # (out+1, in+1) augmented matrices: last input column carries the bias,
    # last output row is [0,...,0,1] so the constant-1 row propagates.
    w1a = jnp.concatenate(
        [jnp.concatenate([w1f.T, b1f.T], axis=1),
         jnp.concatenate([jnp.zeros((1, 3), w1.dtype),
                          jnp.ones((1, 1), w1.dtype)], axis=1)], axis=0)   # (17, 4)
    w2a = jnp.concatenate(
        [jnp.concatenate([w2.T, b2.T], axis=1),
         jnp.concatenate([jnp.zeros((1, 16), w2.dtype),
                          jnp.ones((1, 1), w2.dtype)], axis=1)], axis=0)   # (33, 17)
    wha = jnp.concatenate([wh.T, bh.T], axis=1)                     # (outputs, 33)
    wha = jnp.pad(wha, ((0, out_pad - outputs), (0, 0)))            # (out_pad, 33)
    return w1a.astype(dtype), w2a.astype(dtype), wha.astype(dtype)


def dqn_forward(x, params, *, block_n=16384, matmul_dtype=jnp.bfloat16):
    """x: (N, 3) float32 -> (N, outputs) float32."""
    n = x.shape[0]
    outputs = params[-2].shape[1]
    out_pad = pl.cdiv(outputs, 8) * 8          # full-sublane output block

    w1a, w2a, wha = _fold_params(params, out_pad, matmul_dtype)

    # Feature-major layout: batch lives on the lane axis.  Pad the batch to a
    # lane-aligned tile so the tail block is well defined (no VMEM bounds
    # checks); padded columns are sliced away afterwards.
    nb = min(block_n, pl.cdiv(n, 128) * 128)   # multiple of 128
    n_pad = pl.cdiv(n, nb) * nb
    xt = jnp.pad(x.T, ((0, 0), (0, n_pad - n)))                     # (3, n_pad)
    xt = jnp.concatenate([xt, jnp.ones((1, n_pad), xt.dtype)], axis=0)
    xt = xt.astype(matmul_dtype)                                    # (4, n_pad)

    batch_spec = lambda rows: pl.BlockSpec((rows, nb), lambda i: (0, i))
    const_spec = lambda shape: pl.BlockSpec(shape, lambda i: (0, 0))

    out_t = pl.pallas_call(
        dqn_kernel,
        out_shape=jax.ShapeDtypeStruct((out_pad, n_pad), matmul_dtype),
        grid=(n_pad // nb,),
        in_specs=[
            batch_spec(4),                      # x tile (constant-1 row appended)
            const_spec((17, 4)),                # conv1 (+BN, +bias) folded
            const_spec((33, 17)),               # conv2 (+bias) folded
            const_spec((out_pad, 33)),          # head  (+bias) folded, row-padded
        ],
        out_specs=batch_spec(out_pad),
        compiler_params=pltpu.CompilerParams(
            dimension_semantics=("parallel",)),
    )(xt, w1a, w2a, wha)

    # bf16 output halves the dominant HBM write stream; upcast after slicing.
    return out_t[:outputs, :n].T.astype(jnp.float32)


def make_params(key, outputs=4):
    ks = jax.random.split(key, 10)
    s = 0.1
    w1 = s * jax.random.normal(ks[0], (3, 16), jnp.float32)
    b1 = s * jax.random.normal(ks[1], (1, 16), jnp.float32)
    gamma = 1.0 + s * jax.random.normal(ks[2], (1, 16), jnp.float32)   # BN weight
    beta = s * jax.random.normal(ks[3], (1, 16), jnp.float32)          # BN bias
    mean = s * jax.random.normal(ks[4], (1, 16), jnp.float32)          # running_mean
    var = 1.0 + 0.5 * jax.random.uniform(ks[5], (1, 16), jnp.float32)  # running_var
    w2 = s * jax.random.normal(ks[6], (16, 32), jnp.float32)
    b2 = s * jax.random.normal(ks[7], (1, 32), jnp.float32)
    wh = s * jax.random.normal(ks[8], (32, outputs), jnp.float32)
    bh = s * jax.random.normal(ks[9], (1, outputs), jnp.float32)
    return (w1, b1, gamma, beta, mean, var, w2, b2, wh, bh)


def reference_forward(x, params):
    """Pure-JAX f32 reference (BatchNorm in eval mode with running stats)."""
    (w1, b1, gamma, beta, mean, var, w2, b2, wh, bh) = params
    h = jnp.dot(x, w1) + b1
    h = (h - mean) * gamma / jnp.sqrt(var + BN_EPS) + beta
    h = jnp.maximum(h, 0.0)
    h = jnp.maximum(jnp.dot(h, w2) + b2, 0.0)
    return jnp.dot(h, wh) + bh


def reference_forward_mirror(x, params, matmul_dtype=jnp.bfloat16):
    """Reference mirroring the kernel's exact fold / bf16 cast pipeline."""
    outputs = params[-2].shape[1]
    out_pad = pl.cdiv(outputs, 8) * 8
    w1a, w2a, wha = _fold_params(params, out_pad, matmul_dtype)
    xa = jnp.concatenate([x.T, jnp.ones((1, x.shape[0]), x.dtype)], axis=0)
    xa = xa.astype(matmul_dtype)
    h1 = jnp.maximum(jnp.dot(w1a, xa, preferred_element_type=jnp.float32)
                     .astype(matmul_dtype), 0.0)
    h2 = jnp.maximum(jnp.dot(w2a, h1, preferred_element_type=jnp.float32)
                     .astype(matmul_dtype), 0.0)
    y = jnp.dot(wha, h2, preferred_element_type=jnp.float32).astype(matmul_dtype)
    return y[:outputs].T.astype(jnp.float32)


if __name__ == "__main__":
    key = jax.random.PRNGKey(0)
    kx, kp = jax.random.split(key)

    N, OUTPUTS = 8, 4
    x = jax.random.normal(kx, (N, 3), jnp.float32)
    params = make_params(kp, outputs=OUTPUTS)

    out = jax.block_until_ready(dqn_forward(x, params))
    assert out.shape == (N, OUTPUTS)
    assert out.dtype == jnp.float32

    # Exact-path check: reference applying the same bf16 fold/cast pipeline.
    ref_mirror = reference_forward_mirror(x, params)
    assert jnp.allclose(out, ref_mirror, atol=2e-3, rtol=1e-2), \
        float(jnp.max(jnp.abs(out - ref_mirror)))

    # Semantic check against full-f32 math (bf16 storage costs a few 1e-3 abs).
    ref_f32 = reference_forward(x, params)
    assert jnp.allclose(out, ref_f32, atol=2e-2, rtol=2e-2), \
        float(jnp.max(jnp.abs(out - ref_f32)))

    # Multi-tile grid path: non-aligned batch with a small block -> 3 grid steps.
    N2 = 300
    x2 = jax.random.normal(jax.random.PRNGKey(1), (N2, 3), jnp.float32)
    out2 = jax.block_until_ready(dqn_forward(x2, params, block_n=128))
    assert out2.shape == (N2, OUTPUTS)
    ref2 = reference_forward(x2, params)
    assert jnp.allclose(out2, ref2, atol=2e-2, rtol=2e-2), \
        float(jnp.max(jnp.abs(out2 - ref2)))

    print("KERNEL_OK")
</pallas_src>

<mosaic_0001>
module attributes {stable_mosaic.version = 11 : i64} {
  func.func @dqn_kernel(%arg0: i32, %arg1: memref<4x128xbf16, #tpu.memory_space<vmem>>, %arg2: memref<17x4xbf16, #tpu.memory_space<vmem>>, %arg3: memref<33x17xbf16, #tpu.memory_space<vmem>>, %arg4: memref<8x33xbf16, #tpu.memory_space<vmem>>, %arg5: memref<8x128xbf16, #tpu.memory_space<vmem>>) attributes {dimension_semantics = [#tpu.dimension_semantics<parallel>], iteration_bounds = array<i64: 1>, scalar_prefetch = 0 : i64, scratch_operands = 0 : i64, tpu.core_type = #tpu.core_type<tc>, window_params = [{transform_indices = @transform_0, window_bounds = array<i64: 4, 128>}, {pipeline_mode = #tpu.pipeline_mode<synchronous>, transform_indices = @transform_1, window_bounds = array<i64: 17, 4>}, {pipeline_mode = #tpu.pipeline_mode<synchronous>, transform_indices = @transform_2, window_bounds = array<i64: 33, 17>}, {pipeline_mode = #tpu.pipeline_mode<synchronous>, transform_indices = @transform_3, window_bounds = array<i64: 8, 33>}, {transform_indices = @transform_4, window_bounds = array<i64: 8, 128>}]} {
    %c0 = arith.constant 0 : index
    %c0_0 = arith.constant 0 : index
    %0 = vector.load %arg1[%c0, %c0_0] : memref<4x128xbf16, #tpu.memory_space<vmem>>, vector<4x128xbf16>
    %c0_1 = arith.constant 0 : index
    %c0_2 = arith.constant 0 : index
    %1 = vector.load %arg2[%c0_1, %c0_2] : memref<17x4xbf16, #tpu.memory_space<vmem>>, vector<17x4xbf16>
    %cst = arith.constant dense<0.000000e+00> : vector<17x128xf32>
    %2 = tpu.matmul %1, %0, %cst {dimension_numbers = #tpu.dot_dimension_numbers<[1], [0], [0], [1], [0, 0, 1, 1], [], []>} : vector<17x4xbf16>, vector<4x128xbf16>, vector<17x128xf32> -> vector<17x128xf32>
    %3 = arith.truncf %2 : vector<17x128xf32> to vector<17x128xbf16>
    %cst_3 = arith.constant 0.000000e+00 : bf16
    %4 = vector.broadcast %cst_3 : bf16 to vector<17x128xbf16>
    %5 = arith.maximumf %3, %4 : vector<17x128xbf16>
    %c0_4 = arith.constant 0 : index
    %c0_5 = arith.constant 0 : index
    %6 = vector.load %arg3[%c0_4, %c0_5] : memref<33x17xbf16, #tpu.memory_space<vmem>>, vector<33x17xbf16>
    %cst_6 = arith.constant dense<0.000000e+00> : vector<33x128xf32>
    %7 = tpu.matmul %6, %5, %cst_6 {dimension_numbers = #tpu.dot_dimension_numbers<[1], [0], [0], [1], [0, 0, 1, 1], [], []>} : vector<33x17xbf16>, vector<17x128xbf16>, vector<33x128xf32> -> vector<33x128xf32>
    %8 = arith.truncf %7 : vector<33x128xf32> to vector<33x128xbf16>
    %cst_7 = arith.constant 0.000000e+00 : bf16
    %9 = vector.broadcast %cst_7 : bf16 to vector<33x128xbf16>
    %10 = arith.maximumf %8, %9 : vector<33x128xbf16>
    %c0_8 = arith.constant 0 : index
    %c0_9 = arith.constant 0 : index
    %11 = vector.load %arg4[%c0_8, %c0_9] : memref<8x33xbf16, #tpu.memory_space<vmem>>, vector<8x33xbf16>
    %cst_10 = arith.constant dense<0.000000e+00> : vector<8x128xf32>
    %12 = tpu.matmul %11, %10, %cst_10 {dimension_numbers = #tpu.dot_dimension_numbers<[1], [0], [0], [1], [0, 0, 1, 1], [], []>} : vector<8x33xbf16>, vector<33x128xbf16>, vector<8x128xf32> -> vector<8x128xf32>
    %13 = arith.truncf %12 : vector<8x128xf32> to vector<8x128xbf16>
    %c0_11 = arith.constant 0 : index
    %c0_12 = arith.constant 0 : index
    %14 = vector.load %arg5[%c0_11, %c0_12] : memref<8x128xbf16, #tpu.memory_space<vmem>>, vector<8x128xbf16>
    tpu.vector_store %arg5[%c0_11, %c0_12], %13 {strides = array<i32>} : memref<8x128xbf16, #tpu.memory_space<vmem>>, vector<8x128xbf16>,
    return
  }
  func.func @transform_0(%arg0: i32) -> (i32, i32) {
    %c0_i32 = arith.constant 0 : i32
    %c0_i32_0 = arith.constant 0 : i32
    return %c0_i32, %arg0 : i32, i32
  }
  func.func @transform_1(%arg0: i32) -> (i32, i32) {
    %c0_i32 = arith.constant 0 : i32
    %c0_i32_0 = arith.constant 0 : i32
    %c0_i32_1 = arith.constant 0 : i32
    return %c0_i32, %c0_i32_0 : i32, i32
  }
  func.func @transform_2(%arg0: i32) -> (i32, i32) {
    %c0_i32 = arith.constant 0 : i32
    %c0_i32_0 = arith.constant 0 : i32
    %c0_i32_1 = arith.constant 0 : i32
    return %c0_i32, %c0_i32_0 : i32, i32
  }
  func.func @transform_3(%arg0: i32) -> (i32, i32) {
    %c0_i32 = arith.constant 0 : i32
    %c0_i32_0 = arith.constant 0 : i32
    %c0_i32_1 = arith.constant 0 : i32
    return %c0_i32, %c0_i32_0 : i32, i32
  }
  func.func @transform_4(%arg0: i32) -> (i32, i32) {
    %c0_i32 = arith.constant 0 : i32
    %c0_i32_0 = arith.constant 0 : i32
    return %c0_i32, %arg0 : i32, i32
  }
}

</mosaic_0001>

<llo_original>
// kernel: tpu_custom_call.1
$region0: #{tpu_custom_call.1}
  #allocation0 [shape = 'u32[]', space=smem, size = 0x4, offset = 0x4, fixed_abs, tag = 'smem constant byte address 0x4 - core index']
  #allocation1 [shape = 'u32[72,128]{1,0:T(1,128)}', space=vmem, size = 0x9000, scoped, tag = 'internal scratch']
  %s0 = inlined_call_operand.vmem [shape: bf16[4,128], index: 0, kind: input, shape index: {}]
  %s1 = inlined_call_operand.vmem [shape: bf16[17,4], index: 1, kind: input, shape index: {}]
  %s2 = inlined_call_operand.vmem [shape: bf16[33,17], index: 2, kind: input, shape index: {}]
  %s3 = inlined_call_operand.vmem [shape: bf16[8,33], index: 3, kind: input, shape index: {}]
  %s4 = inlined_call_operand.hbm [shape: bf16[8,128], index: 4, kind: output, shape index: {}]
  %s5 = sld [smem:[#allocation0]]
  $region26: #{tpu_custom_call.1} parent=0
    _
  %s7 = ssub.s32 1, %s5
  %s8 = scalar_select 0, %s7, %s5
  $region1: #{tpu_custom_call.1} parent=0
    #allocation2 [shape = 'u8[2048]{0}', space=vmem, size = 0x800, scoped, tag = 'output window, operand 0, single buffered']
    #allocation3 [shape = 's32[1]{0}', space=sflag, size = 0x4, scoped, tag = 'scoped memory for tpu_custom_call.1']
    %9 = vsyncpa [#allocation3], 0
    // Predicated region
    $region2: #{tpu_custom_call.1} parent=1 // pred_check
      _
    $region3: #{tpu_custom_call.1} parent=1 // pred_check_branch
      %11 = sbr.rel (0) target = $region5
    $region4: #{tpu_custom_call.1} parent=1 // pred_region
      _
    $region5: #{tpu_custom_call.1} parent=1 // pred_fallthru
      _
    // Predicated region
    $region6: #{tpu_custom_call.1} parent=1 // pred_check
      _
    $region7: #{tpu_custom_call.1} parent=1 // pred_check_branch
      %13 = sbr.rel (0) target = $region9
    $region8: #{tpu_custom_call.1} parent=1 // pred_region
      _
    $region9: #{tpu_custom_call.1} parent=1 // pred_fallthru
      _
    // Predicated region
    $region10: #{tpu_custom_call.1} parent=1 // pred_check
      _
    $region11: #{tpu_custom_call.1} parent=1 // pred_check_branch
      %15 = sbr.rel (0) target = $region13
    $region12: #{tpu_custom_call.1} parent=1 // pred_region
      _
    $region13: #{tpu_custom_call.1} parent=1 // pred_fallthru
      _
    // Predicated region
    $region14: #{tpu_custom_call.1} parent=1 // pred_check
      _
    $region15: #{tpu_custom_call.1} parent=1 // pred_check_branch
      %17 = sbr.rel (0) target = $region17
    $region16: #{tpu_custom_call.1} parent=1 // pred_region
      _
    $region17: #{tpu_custom_call.1} parent=1 // pred_fallthru
      _
    %v19 = vld [vmem:[%s0] sm:$0x3]
    %v20 = vld [vmem:[%s1] sm:$0xf]
    %v21 = vld [vmem:[%s1 + $0x4] sm:$0xf]
    %v22 = vld [vmem:[%s1 + $0x8] sm:$0x1]
    %v26 = vunpack.c.l.b16 %v20
    %v27 = vunpack.c.l.b16 %v21
    %v28 = vunpack.c.l.b16 %v22
    %v29 = vpack.c.b16 %v27, %v26
    %v30 = vpack.c.b16 %v28, %v28
    %vm31 = vcmask 31744
    %v33 = vsel %vm31, %v29, 0
    %v36 = vsel %vm31, %v30, 0
    %vm38 = vcmask 1041408
    %v40 = vsel %vm38, %v19, 0
    %42 = vmatpush.bf16.msra.mxu0 0
    %43 = vmatpush.bf16.msra.mxu0 0
    %44 = vmatpush.bf16.msra.mxu0 0
    %45 = vmatpush.bf16.msra.mxu0 0
    %46 = vmatpush.bf16.msra.mxu0 0
    %47 = vmatpush.bf16.msra.mxu0 0
    %48 = vmatpush.bf16.msra.mxu0 0
    %49 = vmatpush.bf16.msra.mxu0 %v40
    %50 = vmatmul.bf16.gmra.mxu0 %v33
    %v51 = vpop.f32.mrf.mxu0
    %v52 = vadd.f32 0.0, %v51
    %v53 = vpop.f32.mrf.mxu0
    %v54 = vadd.f32 0.0, %v53
    %55 = vmatmul.bf16.gmra.mxu0 %v36
    %v56 = vpop.f32.mrf.mxu0
    %v57 = vadd.f32 0.0, %v56
    %v58 = vpop.f32.mrf.mxu0
    %59 = vdwg.mxu0
    %v60 = vpack.c.bf16 %v52, %v52
    %v61 = vpack.c.bf16 %v54, %v54
    %v62 = vpack.c.bf16 %v57, %v57
    %v63 = vunpack.c.l.bf16 %v60
    %v64 = vunpack.c.l.bf16 %v61
    %v65 = vunpack.c.l.bf16 %v62
    %v66 = vmax.f32 %v63, 0.0
    %v67 = vmax.f32 %v64, 0.0
    %v68 = vmax.f32 %v65, 0.0
    %v69 = vpack.c.bf16 %v67, %v66
    %v70 = vpack.c.bf16 %v68, %v68
    %v71 = vld [vmem:[%s2] sm:$0xf]
    %v72 = vld [vmem:[%s2 + $0x4] sm:$0xf]
    %v73 = vld [vmem:[%s2 + $0x8] sm:$0xf]
    %v74 = vld [vmem:[%s2 + $0xc] sm:$0xf]
    %v75 = vld [vmem:[%s2 + $0x10] sm:$0x1]
    %v81 = vunpack.c.l.b16 %v71
    %v82 = vunpack.c.l.b16 %v72
    %v83 = vunpack.c.l.b16 %v73
    %v84 = vunpack.c.l.b16 %v74
    %v85 = vunpack.c.l.b16 %v75
    %v86 = vpack.c.b16 %v82, %v81
    %v87 = vpack.c.b16 %v84, %v83
    %v88 = vpack.c.b16 %v85, %v85
    %vm89 = vcmask 138240
    %v91 = vsel %vm89, %v86, 0
    %v94 = vsel %vm89, %v87, 0
    %v97 = vsel %vm89, %v88, 0
    %vm99 = vcmask 1040384
    %v100 = vsel 0, 4294967295, 65535
    %v101 = vsel %vm99, %v100, 0
    %v103 = vand.u32 %v70, %v101
    %105 = vmatpush.bf16.msra.mxu0 0
    %106 = vmatpush.bf16.msra.mxu0 0
    %107 = vmatpush.bf16.msra.mxu0 0
    %108 = vmatpush.bf16.msra.mxu0 0
    %109 = vmatpush.bf16.msra.mxu0 0
    %110 = vmatpush.bf16.msra.mxu0 0
    %111 = vmatpush.bf16.msra.mxu0 %v103
    %112 = vmatpush.bf16.msra.mxu0 %v69
    %113 = vmatmul.bf16.gmra.mxu0 %v91
    %v114 = vpop.f32.mrf.mxu0
    %v115 = vadd.f32 0.0, %v114
    %v116 = vpop.f32.mrf.mxu0
    %v117 = vadd.f32 0.0, %v116
    %118 = vmatmul.bf16.gmra.mxu0 %v94
    %v119 = vpop.f32.mrf.mxu0
    %v120 = vadd.f32 0.0, %v119
    %v121 = vpop.f32.mrf.mxu0
    %v122 = vadd.f32 0.0, %v121
    %123 = vmatmul.bf16.gmra.mxu0 %v97
    %v124 = vpop.f32.mrf.mxu0
    %v125 = vadd.f32 0.0, %v124
    %v126 = vpop.f32.mrf.mxu0
    %127 = vdwg.mxu0
    %v128 = vpack.c.bf16 %v115, %v115
    %v129 = vpack.c.bf16 %v117, %v117
    %v130 = vpack.c.bf16 %v120, %v120
    %v131 = vpack.c.bf16 %v122, %v122
    %v132 = vpack.c.bf16 %v125, %v125
    %v133 = vunpack.c.l.bf16 %v128
    %v134 = vunpack.c.l.bf16 %v129
    %v135 = vunpack.c.l.bf16 %v130
    %v136 = vunpack.c.l.bf16 %v131
    %v137 = vunpack.c.l.bf16 %v132
    %v138 = vmax.f32 %v133, 0.0
    %v139 = vmax.f32 %v134, 0.0
    %v140 = vmax.f32 %v135, 0.0
    %v141 = vmax.f32 %v136, 0.0
    %v142 = vmax.f32 %v137, 0.0
    %v143 = vpack.c.bf16 %v139, %v138
    %v144 = vpack.c.bf16 %v141, %v140
    %v145 = vpack.c.bf16 %v142, %v142
    %v146 = vld [vmem:[%s3] sm:$0xf]
    %vm147 = vcmask 269312
    %v149 = vsel %vm147, %v146, 0
    %v152 = vand.u32 %v145, %v101
    %154 = vmatpush.bf16.msra.mxu0 0
    %155 = vmatpush.bf16.msra.mxu0 0
    %156 = vmatpush.bf16.msra.mxu0 0
    %157 = vmatpush.bf16.msra.mxu0 0
    %158 = vmatpush.bf16.msra.mxu0 0
    %159 = vmatpush.bf16.msra.mxu0 %v152
    %160 = vmatpush.bf16.msra.mxu0 %v144
    %161 = vmatpush.bf16.msra.mxu0 %v143
    %162 = vmatmul.bf16.gmra.mxu0 %v149
    %v163 = vpop.f32.mrf.mxu0
    %v164 = vadd.f32 0.0, %v163
    %v165 = vpop.f32.mrf.mxu0
    %166 = vdwg.mxu0
    %v167 = vpack.c.bf16 %v164, %v164
    %168 = vst [vmem:[#allocation2] sm:$0xf] %v167
    // Predicated region
    $region18: #{tpu_custom_call.1} parent=1 // pred_check
      _
    $region19: #{tpu_custom_call.1} parent=1 // pred_check_branch
      %170 = sbr.rel (0) target = $region21
    $region20: #{tpu_custom_call.1} parent=1 // pred_region
      %172 = vsyncadd [#allocation3], 0
      %s174 = sshll.u32 [#allocation2], 4
      %s175 = int_to_ptr.vmem [resolvable:$true] %s174
      %s176 = sshll.u32 %s4, 4
      %s177 = int_to_ptr.hbm [resolvable:$true] %s176
      %179 = dma.vmem_to_hbm [thread:$0]  %s175, 64, %s177, [#allocation3]
    $region21: #{tpu_custom_call.1} parent=1 // pred_fallthru
      _
    // Predicated region
    $region22: #{tpu_custom_call.1} parent=1 // pred_check
      _
    $region23: #{tpu_custom_call.1} parent=1 // pred_check_branch
      %181 = sbr.rel (0) target = $region25
    $region24: #{tpu_custom_call.1} parent=1 // pred_region
      %183 = dma.done [#allocation3], 64
    $region25: #{tpu_custom_call.1} parent=1 // pred_fallthru
      _
    %184 = vsyncpa [#allocation3], 1

</llo_original>
